<compile_context>
chip_gen: v5e
topology: v5e:2x2
jax: 0.10.0
libtpu: 0.0.40
codegen_flags: <defaults>
</compile_context>

<pallas_src>
import jax
import jax.numpy as jnp
import numpy as np
from jax.experimental import pallas as pl
from jax.experimental.pallas import tpu as pltpu

HIDDEN_LAYER = 128
_BIAS_ROWS = 8          # single shared 8-sublane block holding b1/b2/bq
_MAX_TILE_B = 1024      # large tiles amortize the ~0.35 us/grid-step overhead
_MIN_SPLIT_B = 128      # only split the batch across >=2 grid steps above this


def _round_up(x, m):
    return (x + m - 1) // m * m


def _make_kernel(p_s, h, action_dim):
    """Build the kernel with static packed-buffer offsets baked in."""
    off_w2 = p_s
    off_wq = off_w2 + h
    off_b = off_wq + h          # bias block start (8-sublane aligned)

    def kernel(state_ref, params_ref, q_ref):
        # bf16 MXU operands, f32 accumulation.
        x = state_ref[...].astype(jnp.bfloat16)              # (tile_b, p_s)

        w1 = params_ref[0:p_s, :]                             # (p_s, h) bf16
        w2 = params_ref[off_w2:off_w2 + h, :]                 # (h, h)
        wq = params_ref[off_wq:off_wq + h, :]                 # (h, h) fused head (zero-padded cols)
        b1 = params_ref[off_b + 0:off_b + 1, :]               # (1, h)
        b2 = params_ref[off_b + 1:off_b + 2, :]               # (1, h)
        bq = params_ref[off_b + 2:off_b + 3, :]               # (1, h)

        h1 = jnp.maximum(
            jnp.dot(x, w1, preferred_element_type=jnp.float32) + b1, 0.0)
        h2 = jnp.maximum(
            jnp.dot(h1.astype(jnp.bfloat16), w2,
                    preferred_element_type=jnp.float32) + b2, 0.0)
        q = jnp.dot(h2.astype(jnp.bfloat16), wq,
                    preferred_element_type=jnp.float32) + bq  # (tile_b, h)

        # Only the first action_dim lanes hold real Q values; store just those
        # (32x less HBM writeback than a lane-padded f32 (., 128) output).
        q_ref[...] = q[:, :action_dim].astype(q_ref.dtype)

    return kernel


def pack_params(params, state_dim, action_dim):
    """Fuse the dueling head and pack all parameters into one bf16 (R, 128) buffer.

    Call once per parameter update (not per forward).  Layout (rows):
      [0, p_s)             : W1   (state_dim rows, zero-padded to p_s)
      [p_s, p_s+128)       : W2
      [.., ..+128)         : W_q = wa + wv - mean(wa, axis=1)   (cols padded to 128)
      [.., ..+8)           : bias block: row0=b1, row1=b2, row2=b_q, rows 3..7 zero
    """
    w1, b1, w2, b2, wa, ba, wv, bv = params
    h = HIDDEN_LAYER
    p_s = _round_up(state_dim, 8)

    # Exact algebraic fusion of the dueling head: Q = h2 @ W_q + b_q.
    wq = wa + wv - jnp.mean(wa, axis=1, keepdims=True)        # (h, action_dim)
    bq = ba + bv - jnp.mean(ba, axis=1, keepdims=True)        # (1, action_dim)

    w1_p = jnp.zeros((p_s, h), jnp.float32).at[:state_dim, :].set(w1)
    wq_p = jnp.zeros((h, h), jnp.float32).at[:, :action_dim].set(wq)

    bias = jnp.zeros((_BIAS_ROWS, h), jnp.float32)
    bias = bias.at[0, :].set(b1[0])
    bias = bias.at[1, :].set(b2[0])
    bias = bias.at[2, :action_dim].set(bq[0])

    packed = jnp.concatenate([w1_p, w2, wq_p, bias], axis=0)
    return packed.astype(jnp.bfloat16)


def _pick_tile(batch):
    """Batch tile: big enough to amortize grid overhead, and >=2 grid steps for
    mid/large batches so v7x's second TensorCore gets work."""
    b_r8 = _round_up(batch, 8)
    if b_r8 >= 2 * _MIN_SPLIT_B:
        return min(_MAX_TILE_B, _round_up(pl.cdiv(b_r8, 2), 8))
    return b_r8


def d3qn_forward(state, packed_params, *, action_dim, tile_b=None):
    """Q = V + (A - mean(A)) via the fused, packed-parameter kernel."""
    B, state_dim = state.shape
    h = HIDDEN_LAYER
    p_s = _round_up(state_dim, 8)

    if tile_b is None:
        tile_b = _pick_tile(B)
    else:
        tile_b = min(_round_up(tile_b, 8), _round_up(B, 8))
    b_pad = _round_up(B, tile_b)
    grid = (b_pad // tile_b,)

    # Skip the pad copy entirely when shapes are already aligned (common case).
    if b_pad != B or p_s != state_dim:
        state_p = jnp.zeros((b_pad, p_s), state.dtype).at[:B, :state_dim].set(state)
    else:
        state_p = state

    r = packed_params.shape[0]

    flops = 2 * b_pad * h * (p_s + h + h)
    bytes_accessed = (state_p.dtype.itemsize * b_pad * p_s
                      + 2 * r * h                      # bf16 params
                      + 4 * b_pad * action_dim)        # f32 Q out

    q_pad = pl.pallas_call(
        _make_kernel(p_s, h, action_dim),
        out_shape=jax.ShapeDtypeStruct((b_pad, action_dim), jnp.float32),
        grid=grid,
        in_specs=[
            pl.BlockSpec((tile_b, p_s), lambda i: (i, 0)),
            pl.BlockSpec((r, h), lambda i: (0, 0)),      # params resident across the grid
        ],
        out_specs=pl.BlockSpec((tile_b, action_dim), lambda i: (i, 0)),
        compiler_params=pltpu.CompilerParams(
            dimension_semantics=("parallel",)),
        cost_estimate=pl.CostEstimate(
            flops=flops, transcendentals=0, bytes_accessed=bytes_accessed),
    )(state_p, packed_params)

    return q_pad[:B] if b_pad != B else q_pad


def init_params(key, state_dim, action_dim):
    """Deterministic init mirroring the PyTorch module's parameter shapes.

    fc1/fc2 weights use fanin_init; heads and biases use nn.Linear defaults.
    Weights are stored as (in, out) = transpose of PyTorch's (out, in).
    """
    ks = jax.random.split(key, 8)

    def uni(k, shape, bound):
        return jax.random.uniform(k, shape, jnp.float32, -bound, bound)

    h = HIDDEN_LAYER
    w1 = uni(ks[0], (state_dim, h), 1.0 / np.sqrt(state_dim))
    b1 = uni(ks[1], (1, h),          1.0 / np.sqrt(state_dim))
    w2 = uni(ks[2], (h, h),          1.0 / np.sqrt(h))
    b2 = uni(ks[3], (1, h),          1.0 / np.sqrt(h))
    wa = uni(ks[4], (h, action_dim), 1.0 / np.sqrt(h))
    ba = uni(ks[5], (1, action_dim), 1.0 / np.sqrt(h))
    wv = uni(ks[6], (h, 1),          1.0 / np.sqrt(h))
    bv = uni(ks[7], (1, 1),          1.0 / np.sqrt(h))
    return (w1, b1, w2, b2, wa, ba, wv, bv)


def d3qn_forward_ref(state, params):
    """Pure-JAX f32 reference with the ORIGINAL (unfused) head, for correctness."""
    (w1, b1, w2, b2, wa, ba, wv, bv) = params
    x = jnp.maximum(state @ w1 + b1, 0.0)
    x = jnp.maximum(x @ w2 + b2, 0.0)
    A = x @ wa + ba
    V = x @ wv + bv
    return V + (A - jnp.mean(A, axis=1, keepdims=True))


if __name__ == "__main__":
    batch = 8
    state_dim = 16
    action_dim = 4

    key = jax.random.PRNGKey(0)
    k_state, k_params = jax.random.split(key)

    state = jax.random.normal(k_state, (batch, state_dim), dtype=jnp.float32)
    params = init_params(k_params, state_dim, action_dim)

    packed = jax.block_until_ready(pack_params(params, state_dim, action_dim))

    q = d3qn_forward(state, packed, action_dim=action_dim)
    q = jax.block_until_ready(q)

    # bf16 MXU operands vs. f32 reference -> ~1e-2 tolerance.
    q_ref = d3qn_forward_ref(state, params)
    np.testing.assert_allclose(np.asarray(q), np.asarray(q_ref), rtol=2e-2, atol=2e-2)

    print("KERNEL_OK")
</pallas_src>

<mosaic_0001>
module attributes {stable_mosaic.version = 11 : i64} {
  func.func @kernel(%arg0: i32, %arg1: memref<8x16xf32, #tpu.memory_space<vmem>>, %arg2: memref<280x128xbf16, #tpu.memory_space<vmem>>, %arg3: memref<8x4xf32, #tpu.memory_space<vmem>>) attributes {dimension_semantics = [#tpu.dimension_semantics<parallel>], iteration_bounds = array<i64: 1>, scalar_prefetch = 0 : i64, scratch_operands = 0 : i64, tpu.core_type = #tpu.core_type<tc>, window_params = [{transform_indices = @transform_0, window_bounds = array<i64: 8, 16>}, {pipeline_mode = #tpu.pipeline_mode<synchronous>, transform_indices = @transform_1, window_bounds = array<i64: 280, 128>}, {transform_indices = @transform_2, window_bounds = array<i64: 8, 4>}]} {
    %c0 = arith.constant 0 : index
    %c0_0 = arith.constant 0 : index
    %0 = vector.load %arg1[%c0, %c0_0] : memref<8x16xf32, #tpu.memory_space<vmem>>, vector<8x16xf32>
    %1 = arith.truncf %0 : vector<8x16xf32> to vector<8x16xbf16>
    %c0_1 = arith.constant 0 : index
    %c0_2 = arith.constant 0 : index
    %2 = vector.load %arg2[%c0_1, %c0_2] : memref<280x128xbf16, #tpu.memory_space<vmem>>, vector<16x128xbf16>
    %c16 = arith.constant 16 : index
    %c0_3 = arith.constant 0 : index
    %3 = vector.load %arg2[%c16, %c0_3] : memref<280x128xbf16, #tpu.memory_space<vmem>>, vector<128x128xbf16>
    %c144 = arith.constant 144 : index
    %c0_4 = arith.constant 0 : index
    %4 = vector.load %arg2[%c144, %c0_4] : memref<280x128xbf16, #tpu.memory_space<vmem>>, vector<128x128xbf16>
    %c272 = arith.constant 272 : index
    %c0_5 = arith.constant 0 : index
    %5 = vector.load %arg2[%c272, %c0_5] : memref<280x128xbf16, #tpu.memory_space<vmem>>, vector<1x128xbf16>
    %c273 = arith.constant 273 : index
    %c0_6 = arith.constant 0 : index
    %6 = vector.load %arg2[%c273, %c0_6] : memref<280x128xbf16, #tpu.memory_space<vmem>>, vector<1x128xbf16>
    %c274 = arith.constant 274 : index
    %c0_7 = arith.constant 0 : index
    %7 = vector.load %arg2[%c274, %c0_7] : memref<280x128xbf16, #tpu.memory_space<vmem>>, vector<1x128xbf16>
    %cst = arith.constant dense<0.000000e+00> : vector<8x128xf32>
    %8 = tpu.matmul %1, %2, %cst {dimension_numbers = #tpu.dot_dimension_numbers<[1], [0], [0], [1], [0, 0, 1, 1], [], []>} : vector<8x16xbf16>, vector<16x128xbf16>, vector<8x128xf32> -> vector<8x128xf32>
    %9 = arith.extf %5 : vector<1x128xbf16> to vector<1x128xf32>
    %10 = vector.broadcast %9 : vector<1x128xf32> to vector<8x128xf32>
    %11 = arith.addf %8, %10 : vector<8x128xf32>
    %cst_8 = arith.constant 0.000000e+00 : f32
    %12 = vector.broadcast %cst_8 : f32 to vector<8x128xf32>
    %13 = arith.maximumf %11, %12 : vector<8x128xf32>
    %14 = arith.truncf %13 : vector<8x128xf32> to vector<8x128xbf16>
    %cst_9 = arith.constant dense<0.000000e+00> : vector<8x128xf32>
    %15 = tpu.matmul %14, %3, %cst_9 {dimension_numbers = #tpu.dot_dimension_numbers<[1], [0], [0], [1], [0, 0, 1, 1], [], []>} : vector<8x128xbf16>, vector<128x128xbf16>, vector<8x128xf32> -> vector<8x128xf32>
    %16 = arith.extf %6 : vector<1x128xbf16> to vector<1x128xf32>
    %17 = vector.broadcast %16 : vector<1x128xf32> to vector<8x128xf32>
    %18 = arith.addf %15, %17 : vector<8x128xf32>
    %cst_10 = arith.constant 0.000000e+00 : f32
    %19 = vector.broadcast %cst_10 : f32 to vector<8x128xf32>
    %20 = arith.maximumf %18, %19 : vector<8x128xf32>
    %21 = arith.truncf %20 : vector<8x128xf32> to vector<8x128xbf16>
    %cst_11 = arith.constant dense<0.000000e+00> : vector<8x128xf32>
    %22 = tpu.matmul %21, %4, %cst_11 {dimension_numbers = #tpu.dot_dimension_numbers<[1], [0], [0], [1], [0, 0, 1, 1], [], []>} : vector<8x128xbf16>, vector<128x128xbf16>, vector<8x128xf32> -> vector<8x128xf32>
    %23 = arith.extf %7 : vector<1x128xbf16> to vector<1x128xf32>
    %24 = vector.broadcast %23 : vector<1x128xf32> to vector<8x128xf32>
    %25 = arith.addf %22, %24 : vector<8x128xf32>
    %26 = vector.extract_strided_slice %25 {offsets = [0, 0], sizes = [8, 4], strides = [1, 1]} : vector<8x128xf32> to vector<8x4xf32>
    %c0_12 = arith.constant 0 : index
    %c0_13 = arith.constant 0 : index
    %27 = vector.load %arg3[%c0_12, %c0_13] : memref<8x4xf32, #tpu.memory_space<vmem>>, vector<8x4xf32>
    tpu.vector_store %arg3[%c0_12, %c0_13], %26 {strides = array<i32>} : memref<8x4xf32, #tpu.memory_space<vmem>>, vector<8x4xf32>,
    return
  }
  func.func @transform_0(%arg0: i32) -> (i32, i32) {
    %c0_i32 = arith.constant 0 : i32
    %c0_i32_0 = arith.constant 0 : i32
    return %arg0, %c0_i32 : i32, i32
  }
  func.func @transform_1(%arg0: i32) -> (i32, i32) {
    %c0_i32 = arith.constant 0 : i32
    %c0_i32_0 = arith.constant 0 : i32
    %c0_i32_1 = arith.constant 0 : i32
    return %c0_i32, %c0_i32_0 : i32, i32
  }
  func.func @transform_2(%arg0: i32) -> (i32, i32) {
    %c0_i32 = arith.constant 0 : i32
    %c0_i32_0 = arith.constant 0 : i32
    return %arg0, %c0_i32 : i32, i32
  }
}

</mosaic_0001>

<llo_original>
// kernel: tpu_custom_call.1
$region0: #{tpu_custom_call.1}
  #allocation0 [shape = 'u32[]', space=smem, size = 0x4, offset = 0x4, fixed_abs, tag = 'smem constant byte address 0x4 - core index']
  #allocation1 [shape = 'u32[72,128]{1,0:T(1,128)}', space=vmem, size = 0x9000, scoped, tag = 'internal scratch']
  %s0 = inlined_call_operand.hbm [shape: f32[8,16], index: 0, kind: input, shape index: {}]
  %s1 = inlined_call_operand.hbm [shape: bf16[280,128], index: 1, kind: input, shape index: {}]
  %s2 = inlined_call_operand.vmem [shape: f32[8,4], index: 2, kind: output, shape index: {}]
  %s3 = sld [smem:[#allocation0]]
  $region26: #{tpu_custom_call.1} parent=0
    _
  %s5 = ssub.s32 1, %s3
  %s6 = scalar_select 0, %s5, %s3
  $region1: #{tpu_custom_call.1} parent=0
    #allocation2 [shape = 'u8[4096]{0}', space=vmem, size = 0x1000, scoped, tag = 'input window, operand 0, single buffered']
    #allocation3 [shape = 's32[1]{0}', space=sflag, size = 0x4, scoped, tag = 'scoped memory for tpu_custom_call.1']
    #allocation4 [shape = 'u8[71680]{0}', space=vmem, size = 0x11800, scoped, tag = 'input window, operand 1, single buffered']
    #allocation5 [shape = 's32[1]{0}', space=sflag, size = 0x4, scoped, tag = 'scoped memory for tpu_custom_call.1']
    %7 = vsyncpa [#allocation3], 0
    %8 = vsyncpa [#allocation5], 0
    // Predicated region
    $region2: #{tpu_custom_call.1} parent=1 // pred_check
      _
    $region3: #{tpu_custom_call.1} parent=1 // pred_check_branch
      %10 = sbr.rel (0) target = $region5
    $region4: #{tpu_custom_call.1} parent=1 // pred_region
      %12 = vsyncadd [#allocation3], 0
      %s14 = sshll.u32 %s0, 4
      %s15 = int_to_ptr.hbm [resolvable:$true] %s14
      %s16 = sshll.u32 [#allocation2], 4
      %s17 = int_to_ptr.vmem [resolvable:$true] %s16
      %19 = dma.hbm_to_vmem [thread:$0]  %s15, 128, %s17, [#allocation3]
    $region5: #{tpu_custom_call.1} parent=1 // pred_fallthru
      _
    // Predicated region
    $region6: #{tpu_custom_call.1} parent=1 // pred_check
      _
    $region7: #{tpu_custom_call.1} parent=1 // pred_check_branch
      %21 = sbr.rel (0) target = $region9
    $region8: #{tpu_custom_call.1} parent=1 // pred_region
      %23 = vsyncadd [#allocation5], 0
      %s24 = sshll.u32 %s1, 4
      %s25 = int_to_ptr.hbm [resolvable:$true] %s24
      %s26 = sshll.u32 [#allocation4], 4
      %s27 = int_to_ptr.vmem [resolvable:$true] %s26
      %32 = dma.hbm_to_vmem [thread:$0]  %s25, 2240, %s27, [#allocation5], 64, 64, 4
    $region9: #{tpu_custom_call.1} parent=1 // pred_fallthru
      _
    // Predicated region
    $region10: #{tpu_custom_call.1} parent=1 // pred_check
      _
    $region11: #{tpu_custom_call.1} parent=1 // pred_check_branch
      %34 = sbr.rel (0) target = $region13
    $region12: #{tpu_custom_call.1} parent=1 // pred_region
      %36 = dma.done [#allocation3], 128
    $region13: #{tpu_custom_call.1} parent=1 // pred_fallthru
      _
    // Predicated region
    $region14: #{tpu_custom_call.1} parent=1 // pred_check
      _
    $region15: #{tpu_custom_call.1} parent=1 // pred_check_branch
      %38 = sbr.rel (0) target = $region17
    $region16: #{tpu_custom_call.1} parent=1 // pred_region
      %40 = dma.done [#allocation5], 2240
    $region17: #{tpu_custom_call.1} parent=1 // pred_fallthru
      _
    %v42 = vld [vmem:[#allocation2] sm:$0xff]
    %v43 = vpack.c.bf16 %v42, %v42
    %v44 = vld [vmem:[#allocation4] sm:$0xf]
    %v45 = vld [vmem:[#allocation4 + $0x4] sm:$0xf]
    %v46 = vld [vmem:[#allocation4 + $0x8] sm:$0xf]
    %v47 = vld [vmem:[#allocation4 + $0xc] sm:$0xf]
    %v48 = vld [vmem:[#allocation4 + $0x10] sm:$0xf]
    %v49 = vld [vmem:[#allocation4 + $0x14] sm:$0xf]
    %v50 = vld [vmem:[#allocation4 + $0x18] sm:$0xf]
    %v51 = vld [vmem:[#allocation4 + $0x1c] sm:$0xf]
    %v52 = vld [vmem:[#allocation4 + $0x20] sm:$0xf]
    %v53 = vld [vmem:[#allocation4 + $0x24] sm:$0xf]
    %v54 = vld [vmem:[#allocation4 + $0x28] sm:$0xf]
    %v55 = vld [vmem:[#allocation4 + $0x2c] sm:$0xf]
    %v56 = vld [vmem:[#allocation4 + $0x30] sm:$0xf]
    %v57 = vld [vmem:[#allocation4 + $0x34] sm:$0xf]
    %v58 = vld [vmem:[#allocation4 + $0x38] sm:$0xf]
    %v59 = vld [vmem:[#allocation4 + $0x3c] sm:$0xf]
    %v60 = vld [vmem:[#allocation4 + $0x40] sm:$0xf]
    %v61 = vld [vmem:[#allocation4 + $0x44] sm:$0xf]
    %v62 = vld [vmem:[#allocation4 + $0x48] sm:$0xf]
    %v63 = vld [vmem:[#allocation4 + $0x4c] sm:$0xf]
    %v64 = vld [vmem:[#allocation4 + $0x50] sm:$0xf]
    %v65 = vld [vmem:[#allocation4 + $0x54] sm:$0xf]
    %v66 = vld [vmem:[#allocation4 + $0x58] sm:$0xf]
    %v67 = vld [vmem:[#allocation4 + $0x5c] sm:$0xf]
    %v68 = vld [vmem:[#allocation4 + $0x60] sm:$0xf]
    %v69 = vld [vmem:[#allocation4 + $0x64] sm:$0xf]
    %v70 = vld [vmem:[#allocation4 + $0x68] sm:$0xf]
    %v71 = vld [vmem:[#allocation4 + $0x6c] sm:$0xf]
    %v72 = vld [vmem:[#allocation4 + $0x70] sm:$0xf]
    %v73 = vld [vmem:[#allocation4 + $0x74] sm:$0xf]
    %v74 = vld [vmem:[#allocation4 + $0x78] sm:$0xf]
    %v75 = vld [vmem:[#allocation4 + $0x7c] sm:$0xf]
    %v76 = vld [vmem:[#allocation4 + $0x80] sm:$0xf]
    %v77 = vld [vmem:[#allocation4 + $0x84] sm:$0xf]
    %v78 = vld [vmem:[#allocation4 + $0x88] sm:$0x1]
    %v79 = vld [vmem:[#allocation4 + $0x88] sm:$0x2]
    %v80 = vunpack.c.l.bf16 %v78
    %v81 = vperm.slane %v80, 0
    %v84 = vunpack.c.l.b16 %v44
    %v85 = vunpack.c.l.b16 %v45
    %v86 = vpack.c.b16 %v85, %v84
    %vm88 = vcmask 130048
    %v90 = vsel %vm88, %v43, 0
    %92 = vmatpush.bf16.msra.mxu0 0
    %93 = vmatpush.bf16.msra.mxu0 0
    %94 = vmatpush.bf16.msra.mxu0 0
    %95 = vmatpush.bf16.msra.mxu0 0
    %96 = vmatpush.bf16.msra.mxu0 0
    %97 = vmatpush.bf16.msra.mxu0 0
    %98 = vmatpush.bf16.msra.mxu0 0
    %99 = vmatpush.bf16.msra.mxu0 %v86
    %100 = vmatmul.bf16.gmra.mxu0 %v90
    %v101 = vpop.f32.mrf.mxu0
    %v102 = vadd.f32 %v81, %v101
    %v103 = vpop.f32.mrf.mxu0
    %104 = vdwg.mxu0
    %v105 = vmax.f32 %v102, 0.0
    %v106 = vpack.c.bf16 %v105, %v105
    %v107 = vperm.slane %v80, 1
    %v124 = vunpack.c.l.b16 %v46
    %v125 = vunpack.c.l.b16 %v47
    %v126 = vunpack.c.l.b16 %v48
    %v127 = vunpack.c.l.b16 %v49
    %v128 = vunpack.c.l.b16 %v50
    %v129 = vunpack.c.l.b16 %v51
    %v130 = vunpack.c.l.b16 %v52
    %v131 = vunpack.c.l.b16 %v53
    %v132 = vunpack.c.l.b16 %v54
    %v133 = vunpack.c.l.b16 %v55
    %v134 = vunpack.c.l.b16 %v56
    %v135 = vunpack.c.l.b16 %v57
    %v136 = vunpack.c.l.b16 %v58
    %v137 = vunpack.c.l.b16 %v59
    %v138 = vunpack.c.l.b16 %v60
    %v139 = vunpack.c.l.b16 %v61
    %v140 = vpack.c.b16 %v125, %v124
    %v141 = vpack.c.b16 %v127, %v126
    %v142 = vpack.c.b16 %v129, %v128
    %v143 = vpack.c.b16 %v131, %v130
    %v144 = vpack.c.b16 %v133, %v132
    %v145 = vpack.c.b16 %v135, %v134
    %v146 = vpack.c.b16 %v137, %v136
    %v147 = vpack.c.b16 %v139, %v138
    %156 = vmatpush.bf16.msra.mxu0 %v147
    %157 = vmatpush.bf16.msra.mxu0 %v146
    %158 = vmatpush.bf16.msra.mxu0 %v145
    %159 = vmatpush.bf16.msra.mxu0 %v144
    %160 = vmatpush.bf16.msra.mxu0 %v143
    %161 = vmatpush.bf16.msra.mxu0 %v142
    %162 = vmatpush.bf16.msra.mxu0 %v141
    %163 = vmatpush.bf16.msra.mxu0 %v140
    %164 = vmatmul.bf16.gmra.mxu0 %v106
    %v165 = vpop.f32.mrf.mxu0
    %v166 = vadd.f32 %v107, %v165
    %v167 = vpop.f32.mrf.mxu0
    %168 = vdwg.mxu0
    %v169 = vmax.f32 %v166, 0.0
    %v170 = vpack.c.bf16 %v169, %v169
    %v171 = vunpack.c.l.bf16 %v79
    %v172 = vperm.slane %v171, 2
    %v189 = vunpack.c.l.b16 %v62
    %v190 = vunpack.c.l.b16 %v63
    %v191 = vunpack.c.l.b16 %v64
    %v192 = vunpack.c.l.b16 %v65
    %v193 = vunpack.c.l.b16 %v66
    %v194 = vunpack.c.l.b16 %v67
    %v195 = vunpack.c.l.b16 %v68
    %v196 = vunpack.c.l.b16 %v69
    %v197 = vunpack.c.l.b16 %v70
    %v198 = vunpack.c.l.b16 %v71
    %v199 = vunpack.c.l.b16 %v72
    %v200 = vunpack.c.l.b16 %v73
    %v201 = vunpack.c.l.b16 %v74
    %v202 = vunpack.c.l.b16 %v75
    %v203 = vunpack.c.l.b16 %v76
    %v204 = vunpack.c.l.b16 %v77
    %v205 = vpack.c.b16 %v190, %v189
    %v206 = vpack.c.b16 %v192, %v191
    %v207 = vpack.c.b16 %v194, %v193
    %v208 = vpack.c.b16 %v196, %v195
    %v209 = vpack.c.b16 %v198, %v197
    %v210 = vpack.c.b16 %v200, %v199
    %v211 = vpack.c.b16 %v202, %v201
    %v212 = vpack.c.b16 %v204, %v203
    %221 = vmatpush.bf16.msra.mxu0 %v212
    %222 = vmatpush.bf16.msra.mxu0 %v211
    %223 = vmatpush.bf16.msra.mxu0 %v210
    %224 = vmatpush.bf16.msra.mxu0 %v209
    %225 = vmatpush.bf16.msra.mxu0 %v208
    %226 = vmatpush.bf16.msra.mxu0 %v207
    %227 = vmatpush.bf16.msra.mxu0 %v206
    %228 = vmatpush.bf16.msra.mxu0 %v205
    %229 = vmatmul.bf16.gmra.mxu0 %v170
    %v230 = vpop.f32.mrf.mxu0
    %v231 = vadd.f32 %v172, %v230
    %v232 = vpop.f32.mrf.mxu0
    %233 = vdwg.mxu0
    %vm234 = vcmask 31744
    %235 = vst.msk [vmem:[%s2] sm:$0xff] %vm234, %v231
    // Predicated region
    $region18: #{tpu_custom_call.1} parent=1 // pred_check
      _
    $region19: #{tpu_custom_call.1} parent=1 // pred_check_branch
      %237 = sbr.rel (0) target = $region21
    $region20: #{tpu_custom_call.1} parent=1 // pred_region
      _
    $region21: #{tpu_custom_call.1} parent=1 // pred_fallthru
      _
    // Predicated region
    $region22: #{tpu_custom_call.1} parent=1 // pred_check
      _
    $region23: #{tpu_custom_call.1} parent=1 // pred_check_branch
      %239 = sbr.rel (0) target = $region25
    $region24: #{tpu_custom_call.1} parent=1 // pred_region
      _
    $region25: #{tpu_custom_call.1} parent=1 // pred_fallthru
      _
    %240 = vsyncpa [#allocation3], 1
    %241 = vsyncpa [#allocation5], 1

</llo_original>
